<compile_context>
chip_gen: v7x
topology: tpu7x:2x2x1
jax: 0.10.0
libtpu: 0.0.40
codegen_flags: <defaults>
</compile_context>

<pallas_src>
import functools

import jax
import jax.numpy as jnp
from jax import lax
from jax.experimental import pallas as pl
from jax.experimental.pallas import tpu as pltpu

block_size = 128   # max context (only tril[:T,:T] is used -> iota mask in-kernel)
n_embd = 256


def _head_kernel(x_ref, wqkv_ref, o_ref, *, head_size):
    BB, T, C = x_ref.shape
    H = head_size

    # Fused QKV projection: one (BB*T, C) x (C, 3H) MXU matmul (M = BB*T).
    x2 = x_ref[...].reshape(BB * T, C)            # collapse leading dims (layout-free)
    qkv = jnp.dot(x2, wqkv_ref[...], preferred_element_type=jnp.float32)  # (BB*T, 3H)
    qkv = qkv.reshape(BB, T, 3 * H)

    q = qkv[:, :, 0 * H:1 * H]                    # pre-scaled by C**-0.5 (folded into Wq)
    k = qkv[:, :, 1 * H:2 * H]
    v = qkv[:, :, 2 * H:3 * H]

    # Attention scores: contract the H axis of q and k directly (no k.T relayout).
    wei = lax.dot_general(
        q, k,
        dimension_numbers=(((2,), (2,)), ((0,), (0,))),
        preferred_element_type=jnp.float32)       # (BB, T, T)

    # Causal mask == masked_fill(tril[:T,:T] == 0, -inf); finite constant avoids
    # any -inf-minus-(-inf) NaN hazard on fully masked rows.
    row = lax.broadcasted_iota(jnp.int32, (BB, T, T), 1)
    col = lax.broadcasted_iota(jnp.int32, (BB, T, T), 2)
    wei = jnp.where(col <= row, wei, jnp.float32(-1e30))

    # Numerically stable softmax along the last axis.
    m = jnp.max(wei, axis=-1, keepdims=True)
    p = jnp.exp(wei - m)
    denom = jnp.sum(p, axis=-1, keepdims=True)
    wei = p * pl.reciprocal(denom, approx=False)

    # dropout: eval mode -> identity
    # TODO(synk): training-mode dropout (pltpu.prng_*) not implemented — eval identity.

    out = lax.dot_general(
        wei, v,
        dimension_numbers=(((2,), (1,)), ((0,), (0,))),
        preferred_element_type=jnp.float32)       # (BB, T, H)

    o_ref[...] = out.astype(o_ref.dtype)


def head_forward(x, wk, wq, wv):
    """x: (B, T, C) float32; wk/wq/wv: (C, H). Returns (B, T, H)."""
    B, T, C = x.shape
    H = wk.shape[1]
    scale = float(C) ** -0.5   # reference scales by C (embedding dim), not head_size

    # Fold the softmax scale into Wq (free) and fuse the three projections into
    # a single (C, 3H) weight -> one MXU matmul instead of three 32-wide ones.
    wqkv = jnp.concatenate([wq * scale, wk, wv], axis=1)

    # Batch handling: fuse the whole batch into a single block when small
    # (removes per-grid-step overhead, raises the MXU M dimension to B*T).
    # Split into 2 parallel steps only when each half still has >=128 rows,
    # so both v7x TensorCores get used on large batches.
    if B % 2 == 0 and (B // 2) * T >= 128:
        nb = 2
    else:
        nb = 1
    BB = B // nb

    kernel = functools.partial(_head_kernel, head_size=H)

    return pl.pallas_call(
        kernel,
        out_shape=jax.ShapeDtypeStruct((B, T, H), x.dtype),
        grid_spec=pltpu.PrefetchScalarGridSpec(
            num_scalar_prefetch=0,
            grid=(nb,),
            in_specs=[
                pl.BlockSpec((BB, T, C), lambda i: (i, 0, 0)),
                pl.BlockSpec((C, 3 * H), lambda i: (0, 0)),  # constant index -> no refetch
            ],
            out_specs=pl.BlockSpec((BB, T, H), lambda i: (i, 0, 0)),
        ),
        compiler_params=pltpu.CompilerParams(
            dimension_semantics=("parallel",)),
    )(x, wqkv)


def head_reference(x, wk, wq, wv):
    """Pure-JAX reference mirroring the PyTorch forward (eval mode)."""
    B, T, C = x.shape
    k = x @ wk
    q = x @ wq
    v = x @ wv
    wei = jnp.einsum("btd,bsd->bts", q, k) * (C ** -0.5)
    mask = jnp.tril(jnp.ones((T, T), dtype=bool))
    wei = jnp.where(mask[None, :, :], wei, -jnp.inf)
    wei = jax.nn.softmax(wei, axis=-1)
    return wei @ v


if __name__ == "__main__":
    # Small shapes consistent with the module: n_embd=256, head_size=32.
    B, T, C, H = 2, 8, n_embd, 32
    assert T <= block_size

    key = jax.random.PRNGKey(0)
    kx, kk, kq, kv = jax.random.split(key, 4)

    x = jax.random.normal(kx, (B, T, C), dtype=jnp.float32)
    # nn.Linear(n_embd, head_size, bias=False).weight is (H, C); we store W^T.
    wk = jax.random.normal(kk, (C, H), dtype=jnp.float32) * (C ** -0.5)
    wq = jax.random.normal(kq, (C, H), dtype=jnp.float32) * (C ** -0.5)
    wv = jax.random.normal(kv, (C, H), dtype=jnp.float32) * (C ** -0.5)

    out = head_forward(x, wk, wq, wv)
    out = jax.block_until_ready(out)

    ref = head_reference(x, wk, wq, wv)
    assert out.shape == (B, T, H)
    assert jnp.allclose(out, ref, atol=1e-4, rtol=1e-4), "mismatch vs reference"

    print("KERNEL_OK")
</pallas_src>

<mosaic_0001>
module attributes {stable_mosaic.version = 11 : i64} {
  func.func @_head_kernel(%arg0: i32, %arg1: memref<2x8x256xf32, #tpu.memory_space<vmem>>, %arg2: memref<256x96xf32, #tpu.memory_space<vmem>>, %arg3: memref<2x8x32xf32, #tpu.memory_space<vmem>>) attributes {dimension_semantics = [#tpu.dimension_semantics<parallel>], iteration_bounds = array<i64: 1>, scalar_prefetch = 0 : i64, scratch_operands = 0 : i64, tpu.core_type = #tpu.core_type<tc>, window_params = [{transform_indices = @transform_0, window_bounds = array<i64: 2, 8, 256>}, {pipeline_mode = #tpu.pipeline_mode<synchronous>, transform_indices = @transform_1, window_bounds = array<i64: 256, 96>}, {transform_indices = @transform_2, window_bounds = array<i64: 2, 8, 32>}]} {
    %c0 = arith.constant 0 : index
    %c0_0 = arith.constant 0 : index
    %c0_1 = arith.constant 0 : index
    %0 = vector.load %arg1[%c0, %c0_0, %c0_1] : memref<2x8x256xf32, #tpu.memory_space<vmem>>, vector<2x8x256xf32>
    %1 = vector.shape_cast %0 : vector<2x8x256xf32> to vector<16x256xf32>
    %c0_2 = arith.constant 0 : index
    %c0_3 = arith.constant 0 : index
    %2 = vector.load %arg2[%c0_2, %c0_3] : memref<256x96xf32, #tpu.memory_space<vmem>>, vector<256x96xf32>
    %cst = arith.constant dense<0.000000e+00> : vector<16x96xf32>
    %3 = tpu.matmul %1, %2, %cst {dimension_numbers = #tpu.dot_dimension_numbers<[1], [0], [0], [1], [0, 0, 1, 1], [], []>} : vector<16x256xf32>, vector<256x96xf32>, vector<16x96xf32> -> vector<16x96xf32>
    %4 = vector.shape_cast %3 : vector<16x96xf32> to vector<2x8x96xf32>
    %5 = vector.extract_strided_slice %4 {offsets = [0, 0, 0], sizes = [2, 8, 32], strides = [1, 1, 1]} : vector<2x8x96xf32> to vector<2x8x32xf32>
    %6 = vector.extract_strided_slice %4 {offsets = [0, 0, 32], sizes = [2, 8, 32], strides = [1, 1, 1]} : vector<2x8x96xf32> to vector<2x8x32xf32>
    %7 = vector.extract_strided_slice %4 {offsets = [0, 0, 64], sizes = [2, 8, 32], strides = [1, 1, 1]} : vector<2x8x96xf32> to vector<2x8x32xf32>
    %cst_4 = arith.constant dense<0.000000e+00> : vector<2x8x8xf32>
    %8 = tpu.matmul %5, %6, %cst_4 {dimension_numbers = #tpu.dot_dimension_numbers<[2], [2], [1], [1], [0, 0, 0, 1, 1, 1], [0], [0]>} : vector<2x8x32xf32>, vector<2x8x32xf32>, vector<2x8x8xf32> -> vector<2x8x8xf32>
    %9 = tpu.iota {dimensions = array<i32: 1>} : vector<2x8x8xi32>
    %10 = tpu.iota {dimensions = array<i32: 2>} : vector<2x8x8xi32>
    %11 = arith.cmpi sle, %10, %9 : vector<2x8x8xi32>
    %cst_5 = arith.constant -1.000000e+30 : f32
    %12 = vector.broadcast %cst_5 : f32 to vector<2x8x8xf32>
    %13 = arith.select %11, %8, %12 : vector<2x8x8xi1>, vector<2x8x8xf32>
    %cst_6 = arith.constant dense<0xFF800000> : vector<2x8xf32>
    %14 = vector.multi_reduction <maximumf>, %13, %cst_6 [2] : vector<2x8x8xf32> to vector<2x8xf32>
    %15 = vector.shape_cast %14 : vector<2x8xf32> to vector<2x8x1xf32>
    %16 = vector.broadcast %15 : vector<2x8x1xf32> to vector<2x8x8xf32>
    %17 = arith.subf %13, %16 : vector<2x8x8xf32>
    %18 = math.exp %17 : vector<2x8x8xf32>
    %cst_7 = arith.constant dense<0.000000e+00> : vector<2x8xf32>
    %19 = vector.multi_reduction <add>, %18, %cst_7 [2] : vector<2x8x8xf32> to vector<2x8xf32>
    %20 = vector.shape_cast %19 : vector<2x8xf32> to vector<2x8x1xf32>
    %21 = tpu.reciprocal %20 : vector<2x8x1xf32> -> vector<2x8x1xf32>
    %22 = vector.broadcast %21 : vector<2x8x1xf32> to vector<2x8x8xf32>
    %23 = arith.mulf %18, %22 : vector<2x8x8xf32>
    %cst_8 = arith.constant dense<0.000000e+00> : vector<2x8x32xf32>
    %24 = tpu.matmul %23, %7, %cst_8 {dimension_numbers = #tpu.dot_dimension_numbers<[2], [1], [1], [2], [0, 0, 0, 1, 1, 2], [0], [0]>} : vector<2x8x8xf32>, vector<2x8x32xf32>, vector<2x8x32xf32> -> vector<2x8x32xf32>
    %c0_9 = arith.constant 0 : index
    %c0_10 = arith.constant 0 : index
    %c0_11 = arith.constant 0 : index
    %25 = vector.load %arg3[%c0_9, %c0_10, %c0_11] : memref<2x8x32xf32, #tpu.memory_space<vmem>>, vector<2x8x32xf32>
    tpu.vector_store %arg3[%c0_9, %c0_10, %c0_11], %24 {strides = array<i32>} : memref<2x8x32xf32, #tpu.memory_space<vmem>>, vector<2x8x32xf32>,
    return
  }
  func.func @transform_0(%arg0: i32) -> (i32, i32, i32) {
    %c0_i32 = arith.constant 0 : i32
    %c0_i32_0 = arith.constant 0 : i32
    %c0_i32_1 = arith.constant 0 : i32
    return %arg0, %c0_i32, %c0_i32_0 : i32, i32, i32
  }
  func.func @transform_1(%arg0: i32) -> (i32, i32) {
    %c0_i32 = arith.constant 0 : i32
    %c0_i32_0 = arith.constant 0 : i32
    %c0_i32_1 = arith.constant 0 : i32
    return %c0_i32, %c0_i32_0 : i32, i32
  }
  func.func @transform_2(%arg0: i32) -> (i32, i32, i32) {
    %c0_i32 = arith.constant 0 : i32
    %c0_i32_0 = arith.constant 0 : i32
    %c0_i32_1 = arith.constant 0 : i32
    return %arg0, %c0_i32, %c0_i32_0 : i32, i32, i32
  }
}

</mosaic_0001>

<llo_original>
// kernel: tpu_custom_call.1
$region0: #{tpu_custom_call.1}
  #allocation0 [shape = 'u32[]', space=smem, size = 0x4, offset = 0x4, fixed_abs, tag = 'smem constant byte address 0x4 - core index']
  #allocation1 [shape = 'u32[144,128]{1,0:T(1,128)}', space=vmem, size = 0x12000, scoped, tag = 'internal scratch']
  %s0 = inlined_call_operand.vmem [shape: f32[2,8,256], index: 0, kind: input, shape index: {}]
  %s1 = inlined_call_operand.vmem [shape: f32[256,96], index: 1, kind: input, shape index: {}]
  %s2 = inlined_call_operand.hbm [shape: f32[2,8,32], index: 2, kind: output, shape index: {}]
  %s3 = sld [smem:[#allocation0]]
  $region18: #{tpu_custom_call.1} parent=0
    _
  %s5 = ssub.s32 1, %s3
  %s6 = scalar_select 0, %s5, %s3
  $region1: #{tpu_custom_call.1} parent=0
    #allocation2 [shape = 'u8[8192]{0}', space=vmem, size = 0x2000, scoped, tag = 'output window, operand 0, single buffered']
    #allocation3 [shape = 's32[1]{0}', space=sflag, size = 0x4, scoped, tag = 'scoped memory for tpu_custom_call.1']
    %7 = vsyncpa [#allocation3], 0
    // Predicated region
    $region2: #{tpu_custom_call.1} parent=1 // pred_check
      _
    $region3: #{tpu_custom_call.1} parent=1 // pred_check_branch
      %9 = sbr.rel (0) target = $region5
    $region4: #{tpu_custom_call.1} parent=1 // pred_region
      _
    $region5: #{tpu_custom_call.1} parent=1 // pred_fallthru
      _
    // Predicated region
    $region6: #{tpu_custom_call.1} parent=1 // pred_check
      _
    $region7: #{tpu_custom_call.1} parent=1 // pred_check_branch
      %11 = sbr.rel (0) target = $region9
    $region8: #{tpu_custom_call.1} parent=1 // pred_region
      _
    $region9: #{tpu_custom_call.1} parent=1 // pred_fallthru
      _
    %v12 = vld [vmem:[%s0] sm:$0xff]
    %v13 = vld [vmem:[%s0 + $0x8] sm:$0xff]
    %v14 = vld [vmem:[%s0 + $0x10] sm:$0xff]
    %v15 = vld [vmem:[%s0 + $0x18] sm:$0xff]
    %v16 = vld [vmem:[%s1] sm:$0xff]
    %v17 = vld [vmem:[%s1 + $0x8] sm:$0xff]
    %v18 = vld [vmem:[%s1 + $0x10] sm:$0xff]
    %v19 = vld [vmem:[%s1 + $0x18] sm:$0xff]
    %v20 = vld [vmem:[%s1 + $0x20] sm:$0xff]
    %v21 = vld [vmem:[%s1 + $0x28] sm:$0xff]
    %v22 = vld [vmem:[%s1 + $0x30] sm:$0xff]
    %v23 = vld [vmem:[%s1 + $0x38] sm:$0xff]
    %v24 = vld [vmem:[%s1 + $0x40] sm:$0xff]
    %v25 = vld [vmem:[%s1 + $0x48] sm:$0xff]
    %v26 = vld [vmem:[%s1 + $0x50] sm:$0xff]
    %v27 = vld [vmem:[%s1 + $0x58] sm:$0xff]
    %v28 = vld [vmem:[%s1 + $0x60] sm:$0xff]
    %v29 = vld [vmem:[%s1 + $0x68] sm:$0xff]
    %v30 = vld [vmem:[%s1 + $0x70] sm:$0xff]
    %v31 = vld [vmem:[%s1 + $0x78] sm:$0xff]
    %v32 = vld [vmem:[%s1 + $0x80] sm:$0xff]
    %v33 = vld [vmem:[%s1 + $0x88] sm:$0xff]
    %v34 = vld [vmem:[%s1 + $0x90] sm:$0xff]
    %v35 = vld [vmem:[%s1 + $0x98] sm:$0xff]
    %v36 = vld [vmem:[%s1 + $0xa0] sm:$0xff]
    %v37 = vld [vmem:[%s1 + $0xa8] sm:$0xff]
    %v38 = vld [vmem:[%s1 + $0xb0] sm:$0xff]
    %v39 = vld [vmem:[%s1 + $0xb8] sm:$0xff]
    %v40 = vld [vmem:[%s1 + $0xc0] sm:$0xff]
    %v41 = vld [vmem:[%s1 + $0xc8] sm:$0xff]
    %v42 = vld [vmem:[%s1 + $0xd0] sm:$0xff]
    %v43 = vld [vmem:[%s1 + $0xd8] sm:$0xff]
    %v44 = vld [vmem:[%s1 + $0xe0] sm:$0xff]
    %v45 = vld [vmem:[%s1 + $0xe8] sm:$0xff]
    %v46 = vld [vmem:[%s1 + $0xf0] sm:$0xff]
    %v47 = vld [vmem:[%s1 + $0xf8] sm:$0xff]
    %48 = vmatprep.subr.mxu0 0.0
    %49 = vmatpush1.msra.mxu0 %v16
    %50 = vmatprep.subr.mxu0 0.0
    %51 = vmatpush1.msra.mxu0 %v17
    %52 = vmatprep.subr.mxu0 0.0
    %53 = vmatpush1.msra.mxu0 %v18
    %54 = vmatprep.subr.mxu0 0.0
    %55 = vmatpush1.msra.mxu0 %v19
    %56 = vmatprep.subr.mxu0 0.0
    %57 = vmatpush1.msra.mxu0 %v20
    %58 = vmatprep.subr.mxu0 0.0
    %59 = vmatpush1.msra.mxu0 %v21
    %60 = vmatprep.subr.mxu0 0.0
    %61 = vmatpush1.msra.mxu0 %v22
    %62 = vmatprep.subr.mxu0 0.0
    %63 = vmatpush1.msra.mxu0 %v23
    %64 = vmatprep.subr.mxu0 0.0
    %65 = vmatpush1.msra.mxu0 %v24
    %66 = vmatprep.subr.mxu0 0.0
    %67 = vmatpush1.msra.mxu0 %v25
    %68 = vmatprep.subr.mxu0 0.0
    %69 = vmatpush1.msra.mxu0 %v26
    %70 = vmatprep.subr.mxu0 0.0
    %71 = vmatpush1.msra.mxu0 %v27
    %72 = vmatprep.subr.mxu0 0.0
    %73 = vmatpush1.msra.mxu0 %v28
    %74 = vmatprep.subr.mxu0 0.0
    %75 = vmatpush1.msra.mxu0 %v29
    %76 = vmatprep.subr.mxu0 0.0
    %77 = vmatpush1.msra.mxu0 %v30
    %78 = vmatprep.subr.mxu0 0.0
    %79 = vmatpush1.msra.mxu0 %v31
    %80 = vmatprep.subr.mxu0 0.0
    %81 = vmatpush1.msra.mxu0 %v32
    %82 = vmatprep.subr.mxu0 0.0
    %83 = vmatpush1.msra.mxu0 %v33
    %84 = vmatprep.subr.mxu0 0.0
    %85 = vmatpush1.msra.mxu0 %v34
    %86 = vmatprep.subr.mxu0 0.0
    %87 = vmatpush1.msra.mxu0 %v35
    %88 = vmatprep.subr.mxu0 0.0
    %89 = vmatpush1.msra.mxu0 %v36
    %90 = vmatprep.subr.mxu0 0.0
    %91 = vmatpush1.msra.mxu0 %v37
    %92 = vmatprep.subr.mxu0 0.0
    %93 = vmatpush1.msra.mxu0 %v38
    %94 = vmatprep.subr.mxu0 0.0
    %95 = vmatpush1.msra.mxu0 %v39
    %96 = vmatprep.subr.mxu0 0.0
    %97 = vmatpush1.msra.mxu0 %v40
    %98 = vmatprep.subr.mxu0 0.0
    %99 = vmatpush1.msra.mxu0 %v41
    %100 = vmatprep.subr.mxu0 0.0
    %101 = vmatpush1.msra.mxu0 %v42
    %102 = vmatprep.subr.mxu0 0.0
    %103 = vmatpush1.msra.mxu0 %v43
    %104 = vmatprep.subr.mxu0 0.0
    %105 = vmatpush1.msra.mxu0 %v44
    %106 = vmatprep.subr.mxu0 0.0
    %107 = vmatpush1.msra.mxu0 %v45
    %108 = vmatprep.subr.mxu0 0.0
    %109 = vmatpush1.msra.mxu0 %v46
    %110 = vmatprep.subr.mxu0 0.0
    %111 = vmatpush1.msra.mxu0 %v47
    %112 = vmatprep.mubr.f32.mxu0 %v13
    %113 = vmatmul.mubr.f32.gmra.mrb[0].mxu0 %v12
    %v114 = vpop.f32.mrb[0].mxu0
    %v115 = vadd.f32 0.0, %v114
    %v116 = vpop.f32.mrb[0].mxu0
    %117 = vmatprep.mubr.f32.mxu0 %v15
    %118 = vmatmul.mubr.f32.gmra.mrb[0].mxu0 %v14
    %v119 = vpop.f32.mrb[0].mxu0
    %v120 = vadd.f32 0.0, %v119
    %v121 = vpop.f32.mrb[0].mxu0
    %122 = vdwg.mxu0
    %124 = vrot.lane.b32.xlu0 %v115, 96
    %v125 = vpop.permute.xlu0 %124
    %vm126 = vcmask 261120
    %v127 = vsel %vm126, %v115, 0
    %v129 = vsel %vm126, %v125, 0
    %131 = vmatprep.subr.mxu0 0.0
    %132 = vmatpush1.xpose.msra.mxu0 %v129
    %133 = vmatprep.subr.mxu0 0.0
    %134 = vmatpush1.xpose.msra.mxu0 0.0
    %135 = vmatprep.subr.mxu0 0.0
    %136 = vmatpush1.xpose.msra.mxu0 0.0
    %137 = vmatprep.subr.mxu0 0.0
    %138 = vmatpush1.xpose.msra.mxu0 0.0
    %139 = vmatprep.subr.mxu0 0.0
    %140 = vmatpush1.xpose.msra.mxu0 0.0
    %141 = vmatprep.subr.mxu0 0.0
    %142 = vmatpush1.xpose.msra.mxu0 0.0
    %143 = vmatprep.subr.mxu0 0.0
    %144 = vmatpush1.xpose.msra.mxu0 0.0
    %145 = vmatprep.subr.mxu0 0.0
    %146 = vmatpush1.xpose.msra.mxu0 0.0
    %147 = vmatprep.subr.mxu0 0.0
    %148 = vmatpush1.xpose.msra.mxu0 0.0
    %149 = vmatprep.subr.mxu0 0.0
    %150 = vmatpush1.xpose.msra.mxu0 0.0
    %151 = vmatprep.subr.mxu0 0.0
    %152 = vmatpush1.xpose.msra.mxu0 0.0
    %153 = vmatprep.subr.mxu0 0.0
    %154 = vmatpush1.xpose.msra.mxu0 0.0
    %155 = vmatprep.subr.mxu0 0.0
    %156 = vmatpush1.xpose.msra.mxu0 0.0
    %157 = vmatprep.subr.mxu0 0.0
    %158 = vmatpush1.xpose.msra.mxu0 0.0
    %159 = vmatprep.subr.mxu0 0.0
    %160 = vmatpush1.xpose.msra.mxu0 0.0
    %161 = vmatprep.subr.mxu0 0.0
    %162 = vmatpush1.xpose.msra.mxu0 0.0
    %163 = vmatprep.subr.mxu0 0.0
    %164 = vmatpush1.xpose.msra.mxu0 0.0
    %165 = vmatprep.subr.mxu0 0.0
    %166 = vmatpush1.xpose.msra.mxu0 0.0
    %167 = vmatprep.subr.mxu0 0.0
    %168 = vmatpush1.xpose.msra.mxu0 0.0
    %169 = vmatprep.subr.mxu0 0.0
    %170 = vmatpush1.xpose.msra.mxu0 0.0
    %171 = vmatprep.subr.mxu0 0.0
    %172 = vmatpush1.xpose.msra.mxu0 0.0
    %173 = vmatprep.subr.mxu0 0.0
    %174 = vmatpush1.xpose.msra.mxu0 0.0
    %175 = vmatprep.subr.mxu0 0.0
    %176 = vmatpush1.xpose.msra.mxu0 0.0
    %177 = vmatprep.subr.mxu0 0.0
    %178 = vmatpush1.xpose.msra.mxu0 0.0
    %179 = vmatprep.subr.mxu0 0.0
    %180 = vmatpush1.xpose.msra.mxu0 0.0
    %181 = vmatprep.subr.mxu0 0.0
    %182 = vmatpush1.xpose.msra.mxu0 0.0
    %183 = vmatprep.subr.mxu0 0.0
    %184 = vmatpush1.xpose.msra.mxu0 0.0
    %185 = vmatprep.subr.mxu0 0.0
    %186 = vmatpush1.xpose.msra.mxu0 0.0
    %187 = vmatprep.subr.mxu0 0.0
    %188 = vmatpush1.xpose.msra.mxu0 0.0
    %189 = vmatprep.subr.mxu0 0.0
    %190 = vmatpush1.xpose.msra.mxu0 0.0
    %191 = vmatprep.subr.mxu0 0.0
    %192 = vmatpush1.xpose.msra.mxu0 0.0
    %193 = vmatprep.subr.mxu0 0.0
    %194 = vmatpush1.xpose.msra.mxu0 0.0
    %195 = vmatprep.mubr.f32.mxu0 0.0
    %196 = vmatmul.mubr.f32.gmra.mrb[0].mxu0 %v127
    %v197 = vpop.f32.mrb[0].mxu0
    %v198 = vadd.f32 0.0, %v197
    %v199 = vpop.f32.mrb[0].mxu0
    %200 = vdwg.mxu0
    %202 = vrot.lane.b32.xlu0 %v120, 96
    %v203 = vpop.permute.xlu0 %202
    %v204 = vsel %vm126, %v120, 0
    %v206 = vsel %vm126, %v203, 0
    %208 = vmatprep.subr.mxu0 0.0
    %209 = vmatpush1.xpose.msra.mxu0 %v206
    %210 = vmatprep.subr.mxu0 0.0
    %211 = vmatpush1.xpose.msra.mxu0 0.0
    %212 = vmatprep.subr.mxu0 0.0
    %213 = vmatpush1.xpose.msra.mxu0 0.0
    %214 = vmatprep.subr.mxu0 0.0
    %215 = vmatpush1.xpose.msra.mxu0 0.0
    %216 = vmatprep.subr.mxu0 0.0
    %217 = vmatpush1.xpose.msra.mxu0 0.0
    %218 = vmatprep.subr.mxu0 0.0
    %219 = vmatpush1.xpose.msra.mxu0 0.0
    %220 = vmatprep.subr.mxu0 0.0
    %221 = vmatpush1.xpose.msra.mxu0 0.0
    %222 = vmatprep.subr.mxu0 0.0
    %223 = vmatpush1.xpose.msra.mxu0 0.0
    %224 = vmatprep.subr.mxu0 0.0
    %225 = vmatpush1.xpose.msra.mxu0 0.0
    %226 = vmatprep.subr.mxu0 0.0
    %227 = vmatpush1.xpose.msra.mxu0 0.0
    %228 = vmatprep.subr.mxu0 0.0
    %229 = vmatpush1.xpose.msra.mxu0 0.0
    %230 = vmatprep.subr.mxu0 0.0
    %231 = vmatpush1.xpose.msra.mxu0 0.0
    %232 = vmatprep.subr.mxu0 0.0
    %233 = vmatpush1.xpose.msra.mxu0 0.0
    %234 = vmatprep.subr.mxu0 0.0
    %235 = vmatpush1.xpose.msra.mxu0 0.0
    %236 = vmatprep.subr.mxu0 0.0
    %237 = vmatpush1.xpose.msra.mxu0 0.0
    %238 = vmatprep.subr.mxu0 0.0
    %239 = vmatpush1.xpose.msra.mxu0 0.0
    %240 = vmatprep.subr.mxu0 0.0
    %241 = vmatpush1.xpose.msra.mxu0 0.0
    %242 = vmatprep.subr.mxu0 0.0
    %243 = vmatpush1.xpose.msra.mxu0 0.0
    %244 = vmatprep.subr.mxu0 0.0
    %245 = vmatpush1.xpose.msra.mxu0 0.0
    %246 = vmatprep.subr.mxu0 0.0
    %247 = vmatpush1.xpose.msra.mxu0 0.0
    %248 = vmatprep.subr.mxu0 0.0
    %249 = vmatpush1.xpose.msra.mxu0 0.0
    %250 = vmatprep.subr.mxu0 0.0
    %251 = vmatpush1.xpose.msra.mxu0 0.0
    %252 = vmatprep.subr.mxu0 0.0
    %253 = vmatpush1.xpose.msra.mxu0 0.0
    %254 = vmatprep.subr.mxu0 0.0
    %255 = vmatpush1.xpose.msra.mxu0 0.0
    %256 = vmatprep.subr.mxu0 0.0
    %257 = vmatpush1.xpose.msra.mxu0 0.0
    %258 = vmatprep.subr.mxu0 0.0
    %259 = vmatpush1.xpose.msra.mxu0 0.0
    %260 = vmatprep.subr.mxu0 0.0
    %261 = vmatpush1.xpose.msra.mxu0 0.0
    %262 = vmatprep.subr.mxu0 0.0
    %263 = vmatpush1.xpose.msra.mxu0 0.0
    %264 = vmatprep.subr.mxu0 0.0
    %265 = vmatpush1.xpose.msra.mxu0 0.0
    %266 = vmatprep.subr.mxu0 0.0
    %267 = vmatpush1.xpose.msra.mxu0 0.0
    %268 = vmatprep.subr.mxu0 0.0
    %269 = vmatpush1.xpose.msra.mxu0 0.0
    %270 = vmatprep.subr.mxu0 0.0
    %271 = vmatpush1.xpose.msra.mxu0 0.0
    %272 = vmatprep.mubr.f32.mxu0 0.0
    %273 = vmatmul.mubr.f32.gmra.mrb[0].mxu0 %v204
    %v274 = vpop.f32.mrb[0].mxu0
    %v275 = vadd.f32 0.0, %v274
    %v276 = vpop.f32.mrb[0].mxu0
    %277 = vdwg.mxu0
    %v278 = vlaneseq
    %v279 = vshrl.u32 %v278, 7
    %v280 = vlaneseq
    %v281 = vand.u32 %v280, 127
    %vm282 = vcmp.le.s32.totalorder %v281, %v279
    %v283 = vsel %vm282, %v198, -1e+30
    %v284 = vsel %vm282, %v275, -1e+30
    %vm285 = vcmask 64512
    %v286 = vsel %vm285, %v283, -inf
    %287 = vmax.xlane.f32.xlu0 %v286
    %v288 = vpop.xlane.xlu0 %287
    %v289 = vsel %vm285, %v284, -inf
    %290 = vmax.xlane.f32.xlu0 %v289
    %v291 = vpop.xlane.xlu0 %290
    %v292 = vsub.f32 %v283, %v288
    %v293 = vsub.f32 %v284, %v291
    %v294 = vmul.f32 %v292, 1.442695
    %v295 = vpow.pop %v294
    %v296 = vmul.f32 %v293, 1.442695
    %v297 = vpow.pop %v296
    %v298 = vsel %vm285, %v295, 0.0
    %299 = vadd.xlane.f32.xlu0 %v298
    %v300 = vpop.xlane.xlu0 %299
    %v301 = vsel %vm285, %v297, 0.0
    %302 = vadd.xlane.f32.xlu0 %v301
    %v303 = vpop.xlane.xlu0 %302
    %v304 = vrcp.pop %v300
    %v305 = vrcp.pop %v303
    %v306 = vmul.f32 %v295, %v304
    %v307 = vmul.f32 %v297, %v305
    %308 = vrot.lane.b32.xlu0 %v115, 64
    %v309 = vpop.permute.xlu0 %308
    %v312 = vsel %vm285, %v306, 0
    %314 = vmatprep.subr.mxu0 0.0
    %315 = vmatpush1.msra.mxu0 %v309
    %316 = vmatprep.subr.mxu0 0.0
    %317 = vmatpush1.msra.mxu0 0.0
    %318 = vmatprep.subr.mxu0 0.0
    %319 = vmatpush1.msra.mxu0 0.0
    %320 = vmatprep.subr.mxu0 0.0
    %321 = vmatpush1.msra.mxu0 0.0
    %322 = vmatprep.subr.mxu0 0.0
    %323 = vmatpush1.msra.mxu0 0.0
    %324 = vmatprep.subr.mxu0 0.0
    %325 = vmatpush1.msra.mxu0 0.0
    %326 = vmatprep.subr.mxu0 0.0
    %327 = vmatpush1.msra.mxu0 0.0
    %328 = vmatprep.subr.mxu0 0.0
    %329 = vmatpush1.msra.mxu0 0.0
    %330 = vmatprep.subr.mxu0 0.0
    %331 = vmatpush1.msra.mxu0 0.0
    %332 = vmatprep.subr.mxu0 0.0
    %333 = vmatpush1.msra.mxu0 0.0
    %334 = vmatprep.subr.mxu0 0.0
    %335 = vmatpush1.msra.mxu0 0.0
    %336 = vmatprep.subr.mxu0 0.0
    %337 = vmatpush1.msra.mxu0 0.0
    %338 = vmatprep.subr.mxu0 0.0
    %339 = vmatpush1.msra.mxu0 0.0
    %340 = vmatprep.subr.mxu0 0.0
    %341 = vmatpush1.msra.mxu0 0.0
    %342 = vmatprep.subr.mxu0 0.0
    %343 = vmatpush1.msra.mxu0 0.0
    %344 = vmatprep.subr.mxu0 0.0
    %345 = vmatpush1.msra.mxu0 0.0
    %346 = vmatprep.subr.mxu0 0.0
    %347 = vmatpush1.msra.mxu0 0.0
    %348 = vmatprep.subr.mxu0 0.0
    %349 = vmatpush1.msra.mxu0 0.0
    %350 = vmatprep.subr.mxu0 0.0
    %351 = vmatpush1.msra.mxu0 0.0
    %352 = vmatprep.subr.mxu0 0.0
    %353 = vmatpush1.msra.mxu0 0.0
    %354 = vmatprep.subr.mxu0 0.0
    %355 = vmatpush1.msra.mxu0 0.0
    %356 = vmatprep.subr.mxu0 0.0
    %357 = vmatpush1.msra.mxu0 0.0
    %358 = vmatprep.subr.mxu0 0.0
    %359 = vmatpush1.msra.mxu0 0.0
    %360 = vmatprep.subr.mxu0 0.0
    %361 = vmatpush1.msra.mxu0 0.0
    %362 = vmatprep.subr.mxu0 0.0
    %363 = vmatpush1.msra.mxu0 0.0
    %364 = vmatprep.subr.mxu0 0.0
    %365 = vmatpush1.msra.mxu0 0.0
    %366 = vmatprep.subr.mxu0 0.0
    %367 = vmatpush1.msra.mxu0 0.0
    %368 = vmatprep.subr.mxu0 0.0
    %369 = vmatpush1.msra.mxu0 0.0
    %370 = vmatprep.subr.mxu0 0.0
    %371 = vmatpush1.msra.mxu0 0.0
    %372 = vmatprep.subr.mxu0 0.0
    %373 = vmatpush1.msra.mxu0 0.0
    %374 = vmatprep.subr.mxu0 0.0
    %375 = vmatpush1.msra.mxu0 0.0
    %376 = vmatprep.subr.mxu0 0.0
    %377 = vmatpush1.msra.mxu0 0.0
    %378 = vmatprep.mubr.f32.mxu0 0.0
    %379 = vmatmul.mubr.f32.gmra.mrb[0].mxu0 %v312
    %v380 = vpop.f32.mrb[0].mxu0
    %v381 = vadd.f32 0.0, %v380
    %v382 = vpop.f32.mrb[0].mxu0
    %383 = vdwg.mxu0
    %384 = vrot.lane.b32.xlu0 %v120, 64
    %v385 = vpop.permute.xlu0 %384
    %v388 = vsel %vm285, %v307, 0
    %390 = vmatprep.subr.mxu0 0.0
    %391 = vmatpush1.msra.mxu0 %v385
    %392 = vmatprep.subr.mxu0 0.0
    %393 = vmatpush1.msra.mxu0 0.0
    %394 = vmatprep.subr.mxu0 0.0
    %395 = vmatpush1.msra.mxu0 0.0
    %396 = vmatprep.subr.mxu0 0.0
    %397 = vmatpush1.msra.mxu0 0.0
    %398 = vmatprep.subr.mxu0 0.0
    %399 = vmatpush1.msra.mxu0 0.0
    %400 = vmatprep.subr.mxu0 0.0
    %401 = vmatpush1.msra.mxu0 0.0
    %402 = vmatprep.subr.mxu0 0.0
    %403 = vmatpush1.msra.mxu0 0.0
    %404 = vmatprep.subr.mxu0 0.0
    %405 = vmatpush1.msra.mxu0 0.0
    %406 = vmatprep.subr.mxu0 0.0
    %407 = vmatpush1.msra.mxu0 0.0
    %408 = vmatprep.subr.mxu0 0.0
    %409 = vmatpush1.msra.mxu0 0.0
    %410 = vmatprep.subr.mxu0 0.0
    %411 = vmatpush1.msra.mxu0 0.0
    %412 = vmatprep.subr.mxu0 0.0
    %413 = vmatpush1.msra.mxu0 0.0
    %414 = vmatprep.subr.mxu0 0.0
    %415 = vmatpush1.msra.mxu0 0.0
    %416 = vmatprep.subr.mxu0 0.0
    %417 = vmatpush1.msra.mxu0 0.0
    %418 = vmatprep.subr.mxu0 0.0
    %419 = vmatpush1.msra.mxu0 0.0
    %420 = vmatprep.subr.mxu0 0.0
    %421 = vmatpush1.msra.mxu0 0.0
    %422 = vmatprep.subr.mxu0 0.0
    %423 = vmatpush1.msra.mxu0 0.0
    %424 = vmatprep.subr.mxu0 0.0
    %425 = vmatpush1.msra.mxu0 0.0
    %426 = vmatprep.subr.mxu0 0.0
    %427 = vmatpush1.msra.mxu0 0.0
    %428 = vmatprep.subr.mxu0 0.0
    %429 = vmatpush1.msra.mxu0 0.0
    %430 = vmatprep.subr.mxu0 0.0
    %431 = vmatpush1.msra.mxu0 0.0
    %432 = vmatprep.subr.mxu0 0.0
    %433 = vmatpush1.msra.mxu0 0.0
    %434 = vmatprep.subr.mxu0 0.0
    %435 = vmatpush1.msra.mxu0 0.0
    %436 = vmatprep.subr.mxu0 0.0
    %437 = vmatpush1.msra.mxu0 0.0
    %438 = vmatprep.subr.mxu0 0.0
    %439 = vmatpush1.msra.mxu0 0.0
    %440 = vmatprep.subr.mxu0 0.0
    %441 = vmatpush1.msra.mxu0 0.0
    %442 = vmatprep.subr.mxu0 0.0
    %443 = vmatpush1.msra.mxu0 0.0
    %444 = vmatprep.subr.mxu0 0.0
    %445 = vmatpush1.msra.mxu0 0.0
    %446 = vmatprep.subr.mxu0 0.0
    %447 = vmatpush1.msra.mxu0 0.0
    %448 = vmatprep.subr.mxu0 0.0
    %449 = vmatpush1.msra.mxu0 0.0
    %450 = vmatprep.subr.mxu0 0.0
    %451 = vmatpush1.msra.mxu0 0.0
    %452 = vmatprep.subr.mxu0 0.0
    %453 = vmatpush1.msra.mxu0 0.0
    %454 = vmatprep.mubr.f32.mxu0 0.0
    %455 = vmatmul.mubr.f32.gmra.mrb[0].mxu0 %v388
    %v456 = vpop.f32.mrb[0].mxu0
    %v457 = vadd.f32 0.0, %v456
    %v458 = vpop.f32.mrb[0].mxu0
    %459 = vdwg.mxu0
    %460 = vst.msk [vmem:[#allocation2] sm:$0xff] %vm126, %v381
    %461 = vst.msk [vmem:[#allocation2 + $0x8] sm:$0xff] %vm126, %v457
    // Predicated region
    $region10: #{tpu_custom_call.1} parent=1 // pred_check
      _
    $region11: #{tpu_custom_call.1} parent=1 // pred_check_branch
      %463 = sbr.rel (0) target = $region13
    $region12: #{tpu_custom_call.1} parent=1 // pred_region
      %s465 = ssub.s32 256, 256
      %466 = vsyncadd [#allocation3], %s465
      %s467 = sshll.u32 [#allocation2], 4
      %s468 = int_to_ptr.vmem [resolvable:$true] %s467
      %473 = dma.vmem_to_hbm [thread:$0]  %s468, 256, %s2, [#allocation3], 128, 128, 8
    $region13: #{tpu_custom_call.1} parent=1 // pred_fallthru
      _
    // Predicated region
    $region14: #{tpu_custom_call.1} parent=1 // pred_check
      _
    $region15: #{tpu_custom_call.1} parent=1 // pred_check_branch
      %475 = sbr.rel (0) target = $region17
    $region16: #{tpu_custom_call.1} parent=1 // pred_region
      %476 = dma.done [#allocation3], 256
    $region17: #{tpu_custom_call.1} parent=1 // pred_fallthru
      _
    %477 = vsyncpa [#allocation3], 1

</llo_original>
